<compile_context>
chip_gen: v5e
topology: v5e:2x2
jax: 0.10.0
libtpu: 0.0.40
codegen_flags: <defaults>
</compile_context>

<pallas_src>
import math

import jax
import jax.numpy as jnp
from jax.experimental import pallas as pl
from jax.experimental.pallas import tpu as pltpu


def _round_up(x, m):
    return ((x + m - 1) // m) * m


def time_embedding_kernel(t_ref, fp_ref, w1_ref, b1_ref, w2_ref, b2_ref, out_ref):
    # t_ref:  (tb, 1)  f32   timesteps for this batch tile
    # fp_ref: (2, Kp)  f32   row 0 = [freq | freq | 0...], row 1 = [0... | pi/2... | 0...]
    # w1_ref: (Kp, C)  bf16, b1_ref: (1, C) f32
    # w2_ref: (C, C)   bf16, b2_ref: (1, C) f32
    # out_ref: (tb, C) f32
    t = t_ref[...]                              # (tb, 1)
    freq = fp_ref[0:1, :]                       # (1, Kp)
    phase = fp_ref[1:2, :]                      # (1, Kp)

    # [sin(t*f), cos(t*f)] in one shot via the phase trick; no lane-axis concat.
    emb = jnp.sin(t * freq + phase)             # (tb, Kp) f32

    # lin1 (bf16 MXU inputs, f32 accumulation) + Swish in f32.
    h = jnp.dot(emb.astype(jnp.bfloat16), w1_ref[...],
                preferred_element_type=jnp.float32) + b1_ref[...]
    h = h * jax.nn.sigmoid(h)                   # Swish: x * sigmoid(x)

    # lin2 (bf16 MXU inputs, f32 accumulation).
    out = jnp.dot(h.astype(jnp.bfloat16), w2_ref[...],
                  preferred_element_type=jnp.float32) + b2_ref[...]
    out_ref[...] = out.astype(out_ref.dtype)


def time_embedding(t, freq, w1, b1, w2, b2, *, block_b=256):
    """t: (B,) float32 timesteps. Returns (B, n_channels) float32."""
    B = t.shape[0]
    half_dim = freq.shape[0]
    K = 2 * half_dim                            # lin1 input dim (n_channels // 4)
    n_channels = w2.shape[1]
    Kp = _round_up(max(K, 128), 128)            # MXU-aligned contraction width

    # Batch tiling: <= block_b rows per grid step, padded to a multiple of the tile.
    tb = min(block_b, _round_up(B, 8))
    Bp = _round_up(B, tb)

    t_pad = jnp.zeros((Bp, 1), jnp.float32).at[:B, 0].set(t.astype(jnp.float32))

    # Row 0: duplicated frequencies; row 1: phase (0 for the sin half, pi/2 for cos).
    # Padded lanes are freq=0, phase=0 -> sin(0) = 0 -> contribute nothing to lin1.
    freq_cat = jnp.concatenate([freq, freq]).astype(jnp.float32)
    phase = jnp.concatenate([jnp.zeros((half_dim,), jnp.float32),
                             jnp.full((half_dim,), jnp.pi / 2, jnp.float32)])
    fp = jnp.zeros((2, Kp), jnp.float32)
    fp = fp.at[0, :K].set(freq_cat).at[1, :K].set(phase)

    # Zero-pad lin1 weights to Kp rows; cast weights to bf16 (f32 accumulation in-kernel).
    w1_p = jnp.zeros((Kp, n_channels), jnp.float32).at[:K, :].set(
        w1.astype(jnp.float32)).astype(jnp.bfloat16)
    w2_c = w2.astype(jnp.bfloat16)
    b1_2d = b1.reshape(1, -1).astype(jnp.float32)
    b2_2d = b2.reshape(1, -1).astype(jnp.float32)

    out = pl.pallas_call(
        time_embedding_kernel,
        out_shape=jax.ShapeDtypeStruct((Bp, n_channels), jnp.float32),
        grid=(Bp // tb,),
        in_specs=[
            pl.BlockSpec((tb, 1), lambda i: (i, 0)),
            pl.BlockSpec((2, Kp), lambda i: (0, 0)),
            pl.BlockSpec((Kp, n_channels), lambda i: (0, 0)),
            pl.BlockSpec((1, n_channels), lambda i: (0, 0)),
            pl.BlockSpec((n_channels, n_channels), lambda i: (0, 0)),
            pl.BlockSpec((1, n_channels), lambda i: (0, 0)),
        ],
        out_specs=pl.BlockSpec((tb, n_channels), lambda i: (i, 0)),
        compiler_params=pltpu.CompilerParams(dimension_semantics=("parallel",)),
    )(t_pad, fp, w1_p, b1_2d, w2_c, b2_2d)
    return out[:B]


def reference(t, freq, w1, b1, w2, b2):
    # Full-f32 reference matching the PyTorch module exactly.
    emb = t[:, None].astype(jnp.float32) * freq[None, :]
    emb = jnp.concatenate([jnp.sin(emb), jnp.cos(emb)], axis=1)
    h = emb @ w1 + b1
    h = h * jax.nn.sigmoid(h)
    return h @ w2 + b2


if __name__ == "__main__":
    # Small, forward-consistent shapes.
    n_channels = 128            # embedding dim produced by the module
    half_dim = n_channels // 8  # 16
    d_in = n_channels // 4      # 32 (input dim of lin1)
    B = 8                       # batch of timesteps

    key = jax.random.PRNGKey(0)
    k_t, k_w1, k_b1, k_w2, k_b2 = jax.random.split(key, 5)

    # Example timesteps (DDPM passes integer steps cast to float).
    t = jax.random.uniform(k_t, (B,), jnp.float32, minval=0.0, maxval=1000.0)

    # Sinusoidal frequencies: exp(arange(half_dim) * -log(10000)/(half_dim-1))
    emb_scale = math.log(10000.0) / (half_dim - 1)
    freq = jnp.exp(jnp.arange(half_dim, dtype=jnp.float32) * -emb_scale)

    # Deterministic synthetic parameters (stored as (in, out), see layout note).
    w1 = jax.random.normal(k_w1, (d_in, n_channels), jnp.float32) * 0.02
    b1 = jax.random.normal(k_b1, (n_channels,), jnp.float32) * 0.01
    w2 = jax.random.normal(k_w2, (n_channels, n_channels), jnp.float32) * 0.02
    b2 = jax.random.normal(k_b2, (n_channels,), jnp.float32) * 0.01

    out = time_embedding(t, freq, w1, b1, w2, b2)
    out = jax.block_until_ready(out)

    ref = reference(t, freq, w1, b1, w2, b2)
    assert out.shape == (B, n_channels)
    # Tolerance accounts for bf16 matmul inputs (f32 accumulation); ample for a
    # time embedding.
    assert jnp.allclose(out, ref, atol=1e-2, rtol=1e-2), "mismatch vs reference"

    print("KERNEL_OK")
</pallas_src>

<mosaic_0001>
module attributes {stable_mosaic.version = 11 : i64} {
  func.func @time_embedding_kernel(%arg0: i32, %arg1: memref<8x1xf32, #tpu.memory_space<vmem>>, %arg2: memref<2x128xf32, #tpu.memory_space<vmem>>, %arg3: memref<128x128xbf16, #tpu.memory_space<vmem>>, %arg4: memref<1x128xf32, #tpu.memory_space<vmem>>, %arg5: memref<128x128xbf16, #tpu.memory_space<vmem>>, %arg6: memref<1x128xf32, #tpu.memory_space<vmem>>, %arg7: memref<8x128xf32, #tpu.memory_space<vmem>>) attributes {dimension_semantics = [#tpu.dimension_semantics<parallel>], iteration_bounds = array<i64: 1>, scalar_prefetch = 0 : i64, scratch_operands = 0 : i64, tpu.core_type = #tpu.core_type<tc>, window_params = [{transform_indices = @transform_0, window_bounds = array<i64: 8, 1>}, {pipeline_mode = #tpu.pipeline_mode<synchronous>, transform_indices = @transform_1, window_bounds = array<i64: 2, 128>}, {pipeline_mode = #tpu.pipeline_mode<synchronous>, transform_indices = @transform_2, window_bounds = array<i64: 128, 128>}, {pipeline_mode = #tpu.pipeline_mode<synchronous>, transform_indices = @transform_3, window_bounds = array<i64: 1, 128>}, {pipeline_mode = #tpu.pipeline_mode<synchronous>, transform_indices = @transform_4, window_bounds = array<i64: 128, 128>}, {pipeline_mode = #tpu.pipeline_mode<synchronous>, transform_indices = @transform_5, window_bounds = array<i64: 1, 128>}, {transform_indices = @transform_6, window_bounds = array<i64: 8, 128>}]} {
    %c0 = arith.constant 0 : index
    %c0_0 = arith.constant 0 : index
    %0 = vector.load %arg1[%c0, %c0_0] : memref<8x1xf32, #tpu.memory_space<vmem>>, vector<8x1xf32>
    %c0_1 = arith.constant 0 : index
    %c0_2 = arith.constant 0 : index
    %1 = vector.load %arg2[%c0_1, %c0_2] : memref<2x128xf32, #tpu.memory_space<vmem>>, vector<1x128xf32>
    %c1 = arith.constant 1 : index
    %c0_3 = arith.constant 0 : index
    %2 = vector.load %arg2[%c1, %c0_3] : memref<2x128xf32, #tpu.memory_space<vmem>>, vector<1x128xf32>
    %3 = vector.broadcast %0 : vector<8x1xf32> to vector<8x128xf32>
    %4 = vector.broadcast %1 : vector<1x128xf32> to vector<8x128xf32>
    %5 = arith.mulf %3, %4 : vector<8x128xf32>
    %6 = vector.broadcast %2 : vector<1x128xf32> to vector<8x128xf32>
    %7 = arith.addf %5, %6 : vector<8x128xf32>
    %8 = math.sin %7 : vector<8x128xf32>
    %9 = arith.truncf %8 : vector<8x128xf32> to vector<8x128xbf16>
    %c0_4 = arith.constant 0 : index
    %c0_5 = arith.constant 0 : index
    %10 = vector.load %arg3[%c0_4, %c0_5] : memref<128x128xbf16, #tpu.memory_space<vmem>>, vector<128x128xbf16>
    %cst = arith.constant dense<0.000000e+00> : vector<8x128xf32>
    %11 = tpu.matmul %9, %10, %cst {dimension_numbers = #tpu.dot_dimension_numbers<[1], [0], [0], [1], [0, 0, 1, 1], [], []>} : vector<8x128xbf16>, vector<128x128xbf16>, vector<8x128xf32> -> vector<8x128xf32>
    %c0_6 = arith.constant 0 : index
    %c0_7 = arith.constant 0 : index
    %12 = vector.load %arg4[%c0_6, %c0_7] : memref<1x128xf32, #tpu.memory_space<vmem>>, vector<1x128xf32>
    %13 = vector.broadcast %12 : vector<1x128xf32> to vector<8x128xf32>
    %14 = arith.addf %11, %13 : vector<8x128xf32>
    %15 = arith.negf %14 : vector<8x128xf32>
    %16 = math.exp %15 : vector<8x128xf32>
    %cst_8 = arith.constant 1.000000e+00 : f32
    %17 = vector.broadcast %cst_8 : f32 to vector<8x128xf32>
    %18 = arith.addf %17, %16 : vector<8x128xf32>
    %19 = arith.divf %17, %18 : vector<8x128xf32>
    %20 = arith.mulf %14, %19 : vector<8x128xf32>
    %21 = arith.truncf %20 : vector<8x128xf32> to vector<8x128xbf16>
    %c0_9 = arith.constant 0 : index
    %c0_10 = arith.constant 0 : index
    %22 = vector.load %arg5[%c0_9, %c0_10] : memref<128x128xbf16, #tpu.memory_space<vmem>>, vector<128x128xbf16>
    %cst_11 = arith.constant dense<0.000000e+00> : vector<8x128xf32>
    %23 = tpu.matmul %21, %22, %cst_11 {dimension_numbers = #tpu.dot_dimension_numbers<[1], [0], [0], [1], [0, 0, 1, 1], [], []>} : vector<8x128xbf16>, vector<128x128xbf16>, vector<8x128xf32> -> vector<8x128xf32>
    %c0_12 = arith.constant 0 : index
    %c0_13 = arith.constant 0 : index
    %24 = vector.load %arg6[%c0_12, %c0_13] : memref<1x128xf32, #tpu.memory_space<vmem>>, vector<1x128xf32>
    %25 = vector.broadcast %24 : vector<1x128xf32> to vector<8x128xf32>
    %26 = arith.addf %23, %25 : vector<8x128xf32>
    %c0_14 = arith.constant 0 : index
    %c0_15 = arith.constant 0 : index
    %27 = vector.load %arg7[%c0_14, %c0_15] : memref<8x128xf32, #tpu.memory_space<vmem>>, vector<8x128xf32>
    tpu.vector_store %arg7[%c0_14, %c0_15], %26 {strides = array<i32>} : memref<8x128xf32, #tpu.memory_space<vmem>>, vector<8x128xf32>,
    return
  }
  func.func @transform_0(%arg0: i32) -> (i32, i32) {
    %c0_i32 = arith.constant 0 : i32
    %c0_i32_0 = arith.constant 0 : i32
    return %arg0, %c0_i32 : i32, i32
  }
  func.func @transform_1(%arg0: i32) -> (i32, i32) {
    %c0_i32 = arith.constant 0 : i32
    %c0_i32_0 = arith.constant 0 : i32
    %c0_i32_1 = arith.constant 0 : i32
    return %c0_i32, %c0_i32_0 : i32, i32
  }
  func.func @transform_2(%arg0: i32) -> (i32, i32) {
    %c0_i32 = arith.constant 0 : i32
    %c0_i32_0 = arith.constant 0 : i32
    %c0_i32_1 = arith.constant 0 : i32
    return %c0_i32, %c0_i32_0 : i32, i32
  }
  func.func @transform_3(%arg0: i32) -> (i32, i32) {
    %c0_i32 = arith.constant 0 : i32
    %c0_i32_0 = arith.constant 0 : i32
    %c0_i32_1 = arith.constant 0 : i32
    return %c0_i32, %c0_i32_0 : i32, i32
  }
  func.func @transform_4(%arg0: i32) -> (i32, i32) {
    %c0_i32 = arith.constant 0 : i32
    %c0_i32_0 = arith.constant 0 : i32
    %c0_i32_1 = arith.constant 0 : i32
    return %c0_i32, %c0_i32_0 : i32, i32
  }
  func.func @transform_5(%arg0: i32) -> (i32, i32) {
    %c0_i32 = arith.constant 0 : i32
    %c0_i32_0 = arith.constant 0 : i32
    %c0_i32_1 = arith.constant 0 : i32
    return %c0_i32, %c0_i32_0 : i32, i32
  }
  func.func @transform_6(%arg0: i32) -> (i32, i32) {
    %c0_i32 = arith.constant 0 : i32
    %c0_i32_0 = arith.constant 0 : i32
    return %arg0, %c0_i32 : i32, i32
  }
}

</mosaic_0001>

<llo_original>
// kernel: tpu_custom_call.1
$region0: #{tpu_custom_call.1}
  #allocation0 [shape = 'u32[]', space=smem, size = 0x4, offset = 0x4, fixed_abs, tag = 'smem constant byte address 0x4 - core index']
  #allocation1 [shape = 'u32[72,128]{1,0:T(1,128)}', space=vmem, size = 0x9000, scoped, tag = 'internal scratch']
  %s0 = inlined_call_operand.vmem [shape: f32[8,1], index: 0, kind: input, shape index: {}]
  %s1 = inlined_call_operand.vmem [shape: f32[2,128], index: 1, kind: input, shape index: {}]
  %s2 = inlined_call_operand.hbm [shape: bf16[128,128], index: 2, kind: input, shape index: {}]
  %s3 = inlined_call_operand.vmem [shape: f32[1,128], index: 3, kind: input, shape index: {}]
  %s4 = inlined_call_operand.hbm [shape: bf16[128,128], index: 4, kind: input, shape index: {}]
  %s5 = inlined_call_operand.vmem [shape: f32[1,128], index: 5, kind: input, shape index: {}]
  %s6 = inlined_call_operand.hbm [shape: f32[8,128], index: 6, kind: output, shape index: {}]
  %s7 = sld [smem:[#allocation0]]
  $region42: #{tpu_custom_call.1} parent=0
    _
  %s9 = ssub.s32 1, %s7
  %s10 = scalar_select 0, %s9, %s7
  $region1: #{tpu_custom_call.1} parent=0
    #allocation2 [shape = 'u8[32768]{0}', space=vmem, size = 0x8000, scoped, tag = 'input window, operand 2, single buffered']
    #allocation3 [shape = 's32[1]{0}', space=sflag, size = 0x4, scoped, tag = 'scoped memory for tpu_custom_call.1']
    #allocation4 [shape = 's32[1]{0}', space=sflag, size = 0x4, scoped, tag = 'scoped memory for tpu_custom_call.1']
    #allocation5 [shape = 'u8[32768]{0}', space=vmem, size = 0x8000, scoped, tag = 'input window, operand 4, single buffered']
    #allocation6 [shape = 's32[1]{0}', space=sflag, size = 0x4, scoped, tag = 'scoped memory for tpu_custom_call.1']
    #allocation7 [shape = 'u8[4096]{0}', space=vmem, size = 0x1000, scoped, tag = 'output window, operand 0, single buffered']
    %11 = vsyncpa [#allocation3], 0
    %12 = vsyncpa [#allocation6], 0
    %13 = vsyncpa [#allocation4], 0
    // Predicated region
    $region2: #{tpu_custom_call.1} parent=1 // pred_check
      _
    $region3: #{tpu_custom_call.1} parent=1 // pred_check_branch
      %15 = sbr.rel (0) target = $region5
    $region4: #{tpu_custom_call.1} parent=1 // pred_region
      _
    $region5: #{tpu_custom_call.1} parent=1 // pred_fallthru
      _
    // Predicated region
    $region6: #{tpu_custom_call.1} parent=1 // pred_check
      _
    $region7: #{tpu_custom_call.1} parent=1 // pred_check_branch
      %17 = sbr.rel (0) target = $region9
    $region8: #{tpu_custom_call.1} parent=1 // pred_region
      _
    $region9: #{tpu_custom_call.1} parent=1 // pred_fallthru
      _
    // Predicated region
    $region10: #{tpu_custom_call.1} parent=1 // pred_check
      _
    $region11: #{tpu_custom_call.1} parent=1 // pred_check_branch
      %19 = sbr.rel (0) target = $region13
    $region12: #{tpu_custom_call.1} parent=1 // pred_region
      %21 = vsyncadd [#allocation3], 0
      %s22 = sshll.u32 %s2, 4
      %s23 = int_to_ptr.hbm [resolvable:$true] %s22
      %s24 = sshll.u32 [#allocation2], 4
      %s25 = int_to_ptr.vmem [resolvable:$true] %s24
      %30 = dma.hbm_to_vmem [thread:$0]  %s23, 1024, %s25, [#allocation3], 64, 64, 4
    $region13: #{tpu_custom_call.1} parent=1 // pred_fallthru
      _
    // Predicated region
    $region14: #{tpu_custom_call.1} parent=1 // pred_check
      _
    $region15: #{tpu_custom_call.1} parent=1 // pred_check_branch
      %32 = sbr.rel (0) target = $region17
    $region16: #{tpu_custom_call.1} parent=1 // pred_region
      _
    $region17: #{tpu_custom_call.1} parent=1 // pred_fallthru
      _
    // Predicated region
    $region18: #{tpu_custom_call.1} parent=1 // pred_check
      _
    $region19: #{tpu_custom_call.1} parent=1 // pred_check_branch
      %34 = sbr.rel (0) target = $region21
    $region20: #{tpu_custom_call.1} parent=1 // pred_region
      %36 = vsyncadd [#allocation6], 0
      %s37 = sshll.u32 %s4, 4
      %s38 = int_to_ptr.hbm [resolvable:$true] %s37
      %s39 = sshll.u32 [#allocation5], 4
      %s40 = int_to_ptr.vmem [resolvable:$true] %s39
      %45 = dma.hbm_to_vmem [thread:$0]  %s38, 1024, %s40, [#allocation6], 64, 64, 4
    $region21: #{tpu_custom_call.1} parent=1 // pred_fallthru
      _
    // Predicated region
    $region22: #{tpu_custom_call.1} parent=1 // pred_check
      _
    $region23: #{tpu_custom_call.1} parent=1 // pred_check_branch
      %47 = sbr.rel (0) target = $region25
    $region24: #{tpu_custom_call.1} parent=1 // pred_region
      _
    $region25: #{tpu_custom_call.1} parent=1 // pred_fallthru
      _
    // Predicated region
    $region26: #{tpu_custom_call.1} parent=1 // pred_check
      _
    $region27: #{tpu_custom_call.1} parent=1 // pred_check_branch
      %49 = sbr.rel (0) target = $region29
    $region28: #{tpu_custom_call.1} parent=1 // pred_region
      %51 = dma.done [#allocation3], 1024
    $region29: #{tpu_custom_call.1} parent=1 // pred_fallthru
      _
    // Predicated region
    $region30: #{tpu_custom_call.1} parent=1 // pred_check
      _
    $region31: #{tpu_custom_call.1} parent=1 // pred_check_branch
      %53 = sbr.rel (0) target = $region33
    $region32: #{tpu_custom_call.1} parent=1 // pred_region
      %55 = dma.done [#allocation6], 1024
    $region33: #{tpu_custom_call.1} parent=1 // pred_fallthru
      _
    %v56 = vld [vmem:[%s0] sm:$0xff]
    %v57 = vld [vmem:[%s1] sm:$0x1]
    %v58 = vld [vmem:[%s1 + $0x1] sm:$0x1]
    %60 = vset.pattern.permute.xlu0 0
    %61 = vperm.xlu0 %60, %v56
    %v62 = vpop.permute.xlu0 %61
    %v64 = vperm.slane %v57, 0
    %v65 = vmul.f32 %v62, %v64
    %v66 = vperm.slane %v58, 0
    %v67 = vadd.f32 %v65, %v66
    %v68 = vand.u32 2147483647, %v67
    %vm69 = vcmp.le.f32.partialorder %v68, 0.7853982
    %vm70 = vcmp.lt.s32.totalorder %v67, 0
    %v71 = vand.u32 %v67, 2139095040
    %v72 = vshrl.u32 %v71, 23
    %v73 = vsub.s32 %v72, 127
    %v74 = vand.u32 2147483647, %v67
    %v75 = vand.u32 %v74, 8388607
    %v76 = vor.u32 %v75, 8388608
    %v77 = vsub.s32 0, %v76
    %v78 = vadd.s32 %v73, 1
    %vm79 = vcmp.gt.s32.totalorder %v78, 0
    %v80 = vsel %vm79, %v78, 0
    %v81 = vshrl.u32 %v80, 5
    %v82 = vand.u32 %v80, 31
    %v83 = vsub.s32 32, %v82
    %v84 = vshrl.u32 683565275, %v83
    %v85 = vshll.u32 683565275, %v82
    %v86 = vshrl.u32 2475754826, %v83
    %v87 = vor.u32 %v85, %v86
    %v88 = vshll.u32 2475754826, %v82
    %v89 = vshrl.u32 2131351028, %v83
    %v90 = vor.u32 %v88, %v89
    %v91 = vshll.u32 2131351028, %v82
    %v92 = vshrl.u32 2102212464, %v83
    %v93 = vor.u32 %v91, %v92
    %v94 = vshll.u32 2102212464, %v82
    %v95 = vshrl.u32 920167782, %v83
    %v96 = vor.u32 %v94, %v95
    %v97 = vshll.u32 920167782, %v82
    %v98 = vshrl.u32 1326507024, %v83
    %v99 = vor.u32 %v97, %v98
    %vm100 = vcmp.lt.s32.totalorder %v81, 1
    %vm101 = vcmp.lt.s32.totalorder %v81, 2
    %vm102 = vcmp.lt.s32.totalorder %v81, 3
    %vm103 = vcmp.lt.s32.totalorder %v81, 4
    %v104 = vsel %vm100, %v84, %v87
    %v105 = vsel %vm103, %v93, 2102212464
    %v106 = vsel %vm102, %v90, %v105
    %v107 = vsel %vm101, %v104, %v106
    %v108 = vsel %vm100, %v87, %v90
    %v109 = vsel %vm103, %v96, 920167782
    %v110 = vsel %vm102, %v93, %v109
    %v111 = vsel %vm101, %v108, %v110
    %v112 = vsel %vm100, %v90, %v93
    %v113 = vsel %vm103, %v99, 1326507024
    %v114 = vsel %vm102, %v96, %v113
    %v115 = vsel %vm101, %v112, %v114
    %v116 = vshll.u32 %v76, 8
    %v117 = vand.u32 %v116, 65535
    %v118 = vshrl.u32 %v116, 16
    %v119 = vand.u32 %v115, 65535
    %v120 = vshrl.u32 %v115, 16
    %v121 = vmul.u32 %v117, %v119
    %v122 = vmul.u32 %v117, %v120
    %v123 = vmul.u32 %v118, %v119
    %v124 = vmul.u32 %v118, %v120
    %v125 = vshll.u32 %v122, 16
    %v126 = vshrl.u32 %v122, 16
    %v127 = vshll.u32 %v123, 16
    %v128 = vshrl.u32 %v123, 16
    %vm129 = vc.u32 %v121, %v125
    %v130 = vsel %vm129, 1, 0
    %v131 = vadd.s32 %v121, %v125
    %v132 = vadd.s32 %v124, %v130
    %vm133 = vc.u32 %v131, %v127
    %v134 = vsel %vm133, 1, 0
    %v135 = vadd.s32 %v131, %v127
    %v136 = vadd.s32 %v132, %v134
    %v137 = vadd.s32 %v136, %v126
    %v138 = vadd.s32 %v137, %v128
    %v139 = vand.u32 %v116, 65535
    %v140 = vshrl.u32 %v116, 16
    %v141 = vand.u32 %v111, 65535
    %v142 = vshrl.u32 %v111, 16
    %v143 = vmul.u32 %v139, %v141
    %v144 = vmul.u32 %v139, %v142
    %v145 = vmul.u32 %v140, %v141
    %v146 = vmul.u32 %v140, %v142
    %v147 = vshll.u32 %v144, 16
    %v148 = vshrl.u32 %v144, 16
    %v149 = vshll.u32 %v145, 16
    %v150 = vshrl.u32 %v145, 16
    %vm151 = vc.u32 %v143, %v147
    %v152 = vsel %vm151, 1, 0
    %v153 = vadd.s32 %v143, %v147
    %v154 = vadd.s32 %v146, %v152
    %vm155 = vc.u32 %v153, %v149
    %v156 = vsel %vm155, 1, 0
    %v157 = vadd.s32 %v153, %v149
    %v158 = vadd.s32 %v154, %v156
    %v159 = vadd.s32 %v158, %v148
    %v160 = vadd.s32 %v159, %v150
    %v161 = vmul.u32 %v116, %v107
    %v162 = vadd.s32 %v138, %v157
    %vm163 = vc.u32 %v138, %v157
    %v164 = vadd.s32 %v160, 1
    %v165 = vsel %vm163, %v164, %v160
    %v166 = vadd.s32 %v161, %v165
    %v167 = vadd.s32 %v166, 536870912
    %v168 = vshrl.u32 %v167, 30
    %v169 = vshll.u32 %v168, 30
    %v170 = vsub.s32 %v166, %v169
    %vm171 = vcmp.lt.s32.totalorder %v170, 0
    %v172 = vsub.s32 0, %v170
    %v173 = vsel %vm171, %v172, %v170
    %v174 = vclz %v173
    %v175 = vsub.s32 %v174, 2
    %vm176 = vcmp.gt.s32.totalorder 0, %v175
    %v177 = vsel %vm176, 0, %v175
    %v178 = vsub.s32 32, %v177
    %v179 = vshll.u32 %v170, %v177
    %v180 = vshrl.u32 %v162, %v178
    %v181 = vor.u32 %v179, %v180
    %v182 = vsub.s32 4294967266, %v177
    %v183 = vadd.s32 %v182, 127
    %v184 = vshll.u32 %v183, 23
    %v185 = vor.u32 4788187, %v184
    %v186 = vand.u32 2147483647, %v185
    %v188 = vcvt.s32.f32 %v181
    %v189 = vmul.f32 %v188, %v186
    %v190 = vxor.u32 %v189, 2147483648
    %v191 = vsel %vm70, %v190, %v189
    %v192 = vsub.s32 4, %v168
    %v193 = vsel %vm70, %v192, %v168
    %v194 = vsel %vm69, %v67, %v191
    %v195 = vsel %vm69, 0, %v193
    %v196 = vmul.f32 %v194, %v194
    %v197 = vmul.f32 %v196, -0.001358992
    %v198 = vadd.f32 %v197, 0.041655596
    %v199 = vmul.f32 %v196, %v198
    %v200 = vadd.f32 %v199, -0.4999988
    %v201 = vmul.f32 %v196, %v200
    %v202 = vadd.f32 1.0, %v201
    %v203 = vmul.f32 %v194, %v194
    %v204 = vmul.f32 %v203, -0.00019511016
    %v205 = vadd.f32 %v204, 0.008332121
    %v206 = vmul.f32 %v203, %v205
    %v207 = vadd.f32 %v206, -0.16666654
    %v208 = vmul.f32 %v203, %v207
    %v209 = vadd.f32 %v208, 1.0
    %v210 = vmul.f32 %v209, %v194
    %vm211 = vweird.f32 %v67
    %v212 = vadd.s32 %v195, 3
    %v213 = vand.u32 %v212, 3
    %vm214 = vcmp.lt.s32.totalorder %v213, 2
    %vm215 = vcmp.eq.s32.totalorder %v213, 0
    %v216 = vxor.u32 %v210, 2147483648
    %v217 = vsel %vm215, %v202, %v216
    %vm218 = vcmp.eq.s32.totalorder %v213, 2
    %v219 = vxor.u32 %v202, 2147483648
    %v220 = vsel %vm218, %v219, %v210
    %v221 = vsel %vm214, %v217, %v220
    %v222 = vsel %vm211, nan, %v221
    %v223 = vpack.c.bf16 %v222, %v222
    %v224 = vld [vmem:[#allocation2] sm:$0xf]
    %v225 = vld [vmem:[#allocation2 + $0x4] sm:$0xf]
    %v226 = vld [vmem:[#allocation2 + $0x8] sm:$0xf]
    %v227 = vld [vmem:[#allocation2 + $0xc] sm:$0xf]
    %v228 = vld [vmem:[#allocation2 + $0x10] sm:$0xf]
    %v229 = vld [vmem:[#allocation2 + $0x14] sm:$0xf]
    %v230 = vld [vmem:[#allocation2 + $0x18] sm:$0xf]
    %v231 = vld [vmem:[#allocation2 + $0x1c] sm:$0xf]
    %v232 = vld [vmem:[#allocation2 + $0x20] sm:$0xf]
    %v233 = vld [vmem:[#allocation2 + $0x24] sm:$0xf]
    %v234 = vld [vmem:[#allocation2 + $0x28] sm:$0xf]
    %v235 = vld [vmem:[#allocation2 + $0x2c] sm:$0xf]
    %v236 = vld [vmem:[#allocation2 + $0x30] sm:$0xf]
    %v237 = vld [vmem:[#allocation2 + $0x34] sm:$0xf]
    %v238 = vld [vmem:[#allocation2 + $0x38] sm:$0xf]
    %v239 = vld [vmem:[#allocation2 + $0x3c] sm:$0xf]
    %v240 = vld [vmem:[%s3] sm:$0x1]
    %v242 = vperm.slane %v240, 0
    %v260 = vunpack.c.l.b16 %v224
    %v261 = vunpack.c.l.b16 %v225
    %v262 = vunpack.c.l.b16 %v226
    %v263 = vunpack.c.l.b16 %v227
    %v264 = vunpack.c.l.b16 %v228
    %v265 = vunpack.c.l.b16 %v229
    %v266 = vunpack.c.l.b16 %v230
    %v267 = vunpack.c.l.b16 %v231
    %v268 = vunpack.c.l.b16 %v232
    %v269 = vunpack.c.l.b16 %v233
    %v270 = vunpack.c.l.b16 %v234
    %v271 = vunpack.c.l.b16 %v235
    %v272 = vunpack.c.l.b16 %v236
    %v273 = vunpack.c.l.b16 %v237
    %v274 = vunpack.c.l.b16 %v238
    %v275 = vunpack.c.l.b16 %v239
    %v276 = vpack.c.b16 %v261, %v260
    %v277 = vpack.c.b16 %v263, %v262
    %v278 = vpack.c.b16 %v265, %v264
    %v279 = vpack.c.b16 %v267, %v266
    %v280 = vpack.c.b16 %v269, %v268
    %v281 = vpack.c.b16 %v271, %v270
    %v282 = vpack.c.b16 %v273, %v272
    %v283 = vpack.c.b16 %v275, %v274
    %292 = vmatpush.bf16.msra.mxu0 %v283
    %293 = vmatpush.bf16.msra.mxu0 %v282
    %294 = vmatpush.bf16.msra.mxu0 %v281
    %295 = vmatpush.bf16.msra.mxu0 %v280
    %296 = vmatpush.bf16.msra.mxu0 %v279
    %297 = vmatpush.bf16.msra.mxu0 %v278
    %298 = vmatpush.bf16.msra.mxu0 %v277
    %299 = vmatpush.bf16.msra.mxu0 %v276
    %300 = vmatmul.bf16.gmra.mxu0 %v223
    %v301 = vpop.f32.mrf.mxu0
    %v302 = vadd.f32 %v242, %v301
    %v303 = vpop.f32.mrf.mxu0
    %304 = vdwg.mxu0
    %v305 = vxor.u32 %v302, 2147483648
    %v306 = vmul.f32 %v305, 1.442695
    %v307 = vpow.pop %v306
    %v308 = vadd.f32 %v307, 1.0
    %v309 = vrcp.pop %v308
    %v310 = vmul.f32 %v308, %v309
    %v311 = vsub.f32 1.0, %v310
    %v312 = vmul.f32 %v309, %v311
    %v313 = vadd.f32 %v309, %v312
    %vm314 = vweird.f32 %v308
    %vm315 = vweird.f32 %v309
    %vm316 = vmor %vm314, %vm315
    %v317 = vsel %vm316, %v309, %v313
    %v318 = vand.u32 2147483647, %v308
    %vm319 = vcmp.eq.f32.partialorder %v318, 8.507059e+37
    %v320 = vand.u32 %v308, 2147483648
    %v321 = vor.u32 1.1754944e-38, %v320
    %v322 = vsel %vm319, %v321, %v317
    %v323 = vmul.f32 1.0, %v322
    %v324 = vmul.f32 %v302, %v323
    %v325 = vpack.c.bf16 %v324, %v324
    %v326 = vld [vmem:[#allocation5] sm:$0xf]
    %v327 = vld [vmem:[#allocation5 + $0x4] sm:$0xf]
    %v328 = vld [vmem:[#allocation5 + $0x8] sm:$0xf]
    %v329 = vld [vmem:[#allocation5 + $0xc] sm:$0xf]
    %v330 = vld [vmem:[#allocation5 + $0x10] sm:$0xf]
    %v331 = vld [vmem:[#allocation5 + $0x14] sm:$0xf]
    %v332 = vld [vmem:[#allocation5 + $0x18] sm:$0xf]
    %v333 = vld [vmem:[#allocation5 + $0x1c] sm:$0xf]
    %v334 = vld [vmem:[#allocation5 + $0x20] sm:$0xf]
    %v335 = vld [vmem:[#allocation5 + $0x24] sm:$0xf]
    %v336 = vld [vmem:[#allocation5 + $0x28] sm:$0xf]
    %v337 = vld [vmem:[#allocation5 + $0x2c] sm:$0xf]
    %v338 = vld [vmem:[#allocation5 + $0x30] sm:$0xf]
    %v339 = vld [vmem:[#allocation5 + $0x34] sm:$0xf]
    %v340 = vld [vmem:[#allocation5 + $0x38] sm:$0xf]
    %v341 = vld [vmem:[#allocation5 + $0x3c] sm:$0xf]
    %v342 = vld [vmem:[%s5] sm:$0x1]
    %v344 = vperm.slane %v342, 0
    %v362 = vunpack.c.l.b16 %v326
    %v363 = vunpack.c.l.b16 %v327
    %v364 = vunpack.c.l.b16 %v328
    %v365 = vunpack.c.l.b16 %v329
    %v366 = vunpack.c.l.b16 %v330
    %v367 = vunpack.c.l.b16 %v331
    %v368 = vunpack.c.l.b16 %v332
    %v369 = vunpack.c.l.b16 %v333
    %v370 = vunpack.c.l.b16 %v334
    %v371 = vunpack.c.l.b16 %v335
    %v372 = vunpack.c.l.b16 %v336
    %v373 = vunpack.c.l.b16 %v337
    %v374 = vunpack.c.l.b16 %v338
    %v375 = vunpack.c.l.b16 %v339
    %v376 = vunpack.c.l.b16 %v340
    %v377 = vunpack.c.l.b16 %v341
    %v378 = vpack.c.b16 %v363, %v362
    %v379 = vpack.c.b16 %v365, %v364
    %v380 = vpack.c.b16 %v367, %v366
    %v381 = vpack.c.b16 %v369, %v368
    %v382 = vpack.c.b16 %v371, %v370
    %v383 = vpack.c.b16 %v373, %v372
    %v384 = vpack.c.b16 %v375, %v374
    %v385 = vpack.c.b16 %v377, %v376
    %394 = vmatpush.bf16.msra.mxu0 %v385
    %395 = vmatpush.bf16.msra.mxu0 %v384
    %396 = vmatpush.bf16.msra.mxu0 %v383
    %397 = vmatpush.bf16.msra.mxu0 %v382
    %398 = vmatpush.bf16.msra.mxu0 %v381
    %399 = vmatpush.bf16.msra.mxu0 %v380
    %400 = vmatpush.bf16.msra.mxu0 %v379
    %401 = vmatpush.bf16.msra.mxu0 %v378
    %402 = vmatmul.bf16.gmra.mxu0 %v325
    %v403 = vpop.f32.mrf.mxu0
    %v404 = vadd.f32 %v344, %v403
    %v405 = vpop.f32.mrf.mxu0
    %406 = vdwg.mxu0
    %407 = vst [vmem:[#allocation7] sm:$0xff] %v404
    // Predicated region
    $region34: #{tpu_custom_call.1} parent=1 // pred_check
      _
    $region35: #{tpu_custom_call.1} parent=1 // pred_check_branch
      %409 = sbr.rel (0) target = $region37
    $region36: #{tpu_custom_call.1} parent=1 // pred_region
      %411 = vsyncadd [#allocation4], 0
      %s413 = sshll.u32 [#allocation7], 4
      %s414 = int_to_ptr.vmem [resolvable:$true] %s413
      %s415 = sshll.u32 %s6, 4
      %s416 = int_to_ptr.hbm [resolvable:$true] %s415
      %418 = dma.vmem_to_hbm [thread:$0]  %s414, 128, %s416, [#allocation4]
    $region37: #{tpu_custom_call.1} parent=1 // pred_fallthru
      _
    // Predicated region
    $region38: #{tpu_custom_call.1} parent=1 // pred_check
      _
    $region39: #{tpu_custom_call.1} parent=1 // pred_check_branch
      %420 = sbr.rel (0) target = $region41
    $region40: #{tpu_custom_call.1} parent=1 // pred_region
      %422 = dma.done [#allocation4], 128
    $region41: #{tpu_custom_call.1} parent=1 // pred_fallthru
      _
    %423 = vsyncpa [#allocation3], 1
    %424 = vsyncpa [#allocation6], 1
    %425 = vsyncpa [#allocation4], 1

</llo_original>
